<compile_context>
chip_gen: v6e
topology: v6e:2x2x1
jax: 0.10.0
libtpu: 0.0.40
codegen_flags: <defaults>
</compile_context>

<pallas_src>
from functools import partial

import jax
import jax.numpy as jnp
from jax import lax
from jax.experimental import pallas as pl
from jax.experimental.pallas import tpu as pltpu


def conv_relu_pool_kernel(p_ref, w_ref, o_ref):
    """Fused conv(+bias) -> maxpool -> ReLU for all batches and pool windows at once.

    p_ref: (Mp, npool*KKp) f32 — im2col patches; pool window q occupies lanes
           [q*KKp, (q+1)*KKp); column q*KKp+KK is 1.0 (bias hook), remaining pad is 0.
    w_ref: (npool*KKp, npool*Cout) f32 — block-diagonal; each diagonal block is the
           (KKp, Cout) conv weight with the bias in row KK.
    o_ref: (Mp, Cout) f32.
    """
    cout = o_ref.shape[1]
    npool = w_ref.shape[1] // cout

    # Single lane-dense MXU matmul (f32 accumulate).  Window q's conv+bias result lands
    # in lanes [q*cout, (q+1)*cout) of the (Mp, npool*cout) result.
    y = jnp.dot(p_ref[...], w_ref[...], preferred_element_type=jnp.float32)

    # MaxPool2d(kernel_size=pk): butterfly max over the npool lane groups.  The lane
    # rotations land on the otherwise-idle XLU slot; after log2(npool) roll+max steps,
    # lanes [0, cout) hold the max over all pool-window positions.
    m = y
    g = npool
    while g > 1:
        g //= 2
        m = jnp.maximum(m, pltpu.roll(m, shift=g * cout, axis=1))

    # ReLU epilogue (bias already applied inside the matmul; ReLU and max commute since
    # ReLU is monotone, so this matches PyTorch's ReLU -> MaxPool order exactly).
    o_ref[...] = jnp.maximum(m[:, :cout], 0.0)
    # TODO(synk): Dropout(p=0.0) is the identity; nonzero-p training-mode dropout would
    # need pltpu.prng_seed / pltpu.prng_random_bits here.


def _round_up(a, b):
    return ((a + b - 1) // b) * b


@partial(jax.jit, static_argnames=("kernel_size", "kernel_pooling"))
def conv_pool_forward(x_nchw, weight, bias, kernel_size=3, kernel_pooling=2):
    N, Cin, H, W = x_nchw.shape
    Cout = weight.shape[0]
    K = kernel_size
    pk = kernel_pooling
    Ho, Wo = H - K + 1, W - K + 1
    Hp, Wp = Ho // pk, Wo // pk          # MaxPool2d floor behaviour
    P = Hp * Wp
    KK = K * K * Cin                     # 27 conv features per patch
    KKp = _round_up(KK + 1, 8)           # +1 bias column, aligned -> 32
    npool = pk * pk                      # 4 pool-window positions
    assert npool & (npool - 1) == 0, "pool-window count must be a power of two"
    M = N * P                            # 98 output rows (all batches fused)
    Mp = _round_up(M, 8)                 # 104, 8-aligned rows

    # ---- im2col glue (plain JAX; jit fuses it into one patch-producing pass) ----------
    x_nhwc = jnp.transpose(x_nchw, (0, 2, 3, 1)).astype(jnp.float32)      # (N,H,W,Cin)
    cols = jnp.concatenate(
        [x_nhwc[:, kh:kh + Ho, kw:kw + Wo, :] for kh in range(K) for kw in range(K)],
        axis=-1)                                                          # (N,Ho,Wo,KK), order (kh,kw,ci)
    cols = cols[:, :Hp * pk, :Wp * pk, :]                                 # floor-crop odd Ho/Wo
    cols = cols.reshape(N, Hp, pk, Wp, pk, KK)
    cols = jnp.transpose(cols, (0, 1, 3, 2, 4, 5))                        # (N,Hp,Wp,ph,pw,KK)
    cols = cols.reshape(M, npool, KK)
    # Bias column (1.0) + zero pad to KKp, then pack pool windows into the lane dim.
    patches = jnp.concatenate(
        [cols,
         jnp.ones((M, npool, 1), jnp.float32),
         jnp.zeros((M, npool, KKp - KK - 1), jnp.float32)], axis=-1)      # (M,npool,KKp)
    patches = patches.reshape(M, npool * KKp)                             # (M,128) lane-dense
    patches = jnp.pad(patches, ((0, Mp - M), (0, 0)))                     # (Mp,128), pad rows all-zero

    # Conv weight (Cout,Cin,KH,KW) -> (KK,Cout) in (kh,kw,ci) order, bias folded as row KK,
    # then replicated on the diagonal of a (npool*KKp, npool*Cout) block-diagonal RHS.
    w2 = jnp.transpose(weight, (2, 3, 1, 0)).reshape(KK, Cout).astype(jnp.float32)
    wb = jnp.concatenate(
        [w2,
         bias.reshape(1, Cout).astype(jnp.float32),
         jnp.zeros((KKp - KK - 1, Cout), jnp.float32)], axis=0)           # (KKp,Cout)
    w_blk = jnp.kron(jnp.eye(npool, dtype=jnp.float32), wb)               # (128,128) block-diag

    out = pl.pallas_call(
        conv_relu_pool_kernel,
        out_shape=jax.ShapeDtypeStruct((Mp, Cout), jnp.float32),
        in_specs=[
            pl.BlockSpec(memory_space=pltpu.MemorySpace.VMEM),   # patches, whole array
            pl.BlockSpec(memory_space=pltpu.MemorySpace.VMEM),   # block-diag weight + bias
        ],
        out_specs=pl.BlockSpec(memory_space=pltpu.MemorySpace.VMEM),
    )(patches, w_blk)

    # Drop row padding, back to NCHW: (Mp,Cout) -> (N,Hp,Wp,Cout) -> (N,Cout,Hp,Wp).
    return jnp.transpose(out[:M].reshape(N, Hp, Wp, Cout), (0, 3, 1, 2))


def reference_forward(x, weight, bias, kernel_pooling=2):
    y = lax.conv_general_dilated(x, weight, (1, 1), "VALID",
                                 dimension_numbers=("NCHW", "OIHW", "NCHW"),
                                 precision=lax.Precision.HIGHEST)
    y = y + bias.reshape(1, -1, 1, 1)
    y = jnp.maximum(y, 0.0)
    y = lax.reduce_window(y, -jnp.inf, lax.max,
                          (1, 1, kernel_pooling, kernel_pooling),
                          (1, 1, kernel_pooling, kernel_pooling), "VALID")
    return y


if __name__ == "__main__":
    key = jax.random.PRNGKey(0)
    kx, kw, kb = jax.random.split(key, 3)

    N, Cin, H, W = 2, 3, 16, 16        # input_size=3 (module default)
    Cout, K = 32, 3                    # hidden_size=32, kernel_size=3

    x = jax.random.normal(kx, (N, Cin, H, W), dtype=jnp.float32)
    # Deterministic synthetic parameters (Conv2d(3, 32, 3) shapes).
    weight = jax.random.normal(kw, (Cout, Cin, K, K), dtype=jnp.float32) * 0.1
    bias = jax.random.normal(kb, (Cout,), dtype=jnp.float32) * 0.1

    out = conv_pool_forward(x, weight, bias, kernel_size=K, kernel_pooling=2)
    out = jax.block_until_ready(out)

    ref = reference_forward(x, weight, bias, kernel_pooling=2)
    assert out.shape == (N, Cout, (H - K + 1) // 2, (W - K + 1) // 2), out.shape
    # f32 MXU operands (per review): tight parity with the f32 reference.
    assert jnp.allclose(out, ref, rtol=2e-3, atol=2e-3), float(jnp.max(jnp.abs(out - ref)))

    print("KERNEL_OK")
</pallas_src>

<mosaic_0001>
module attributes {stable_mosaic.version = 11 : i64} {
  func.func @conv_relu_pool_kernel(%arg0: memref<104x128xf32, #tpu.memory_space<vmem>>, %arg1: memref<128x128xf32, #tpu.memory_space<vmem>>, %arg2: memref<104x32xf32, #tpu.memory_space<vmem>>) attributes {dimension_semantics = [], scalar_prefetch = 0 : i64, scratch_operands = 0 : i64, tpu.core_type = #tpu.core_type<tc>} {
    %c0 = arith.constant 0 : index
    %c0_0 = arith.constant 0 : index
    %0 = vector.load %arg0[%c0, %c0_0] : memref<104x128xf32, #tpu.memory_space<vmem>>, vector<104x128xf32>
    %c0_1 = arith.constant 0 : index
    %c0_2 = arith.constant 0 : index
    %1 = vector.load %arg1[%c0_1, %c0_2] : memref<128x128xf32, #tpu.memory_space<vmem>>, vector<128x128xf32>
    %cst = arith.constant dense<0.000000e+00> : vector<104x128xf32>
    %2 = tpu.matmul %0, %1, %cst {dimension_numbers = #tpu.dot_dimension_numbers<[1], [0], [0], [1], [0, 0, 1, 1], [], []>} : vector<104x128xf32>, vector<128x128xf32>, vector<104x128xf32> -> vector<104x128xf32>
    %c64_i32 = arith.constant 64 : i32
    %3 = tpu.dynamic_rotate %2 by %c64_i32 dim 1 : vector<104x128xf32>, i32 -> vector<104x128xf32>
    %4 = arith.maximumf %2, %3 : vector<104x128xf32>
    %c32_i32 = arith.constant 32 : i32
    %5 = tpu.dynamic_rotate %4 by %c32_i32 dim 1 : vector<104x128xf32>, i32 -> vector<104x128xf32>
    %6 = arith.maximumf %4, %5 : vector<104x128xf32>
    %7 = vector.extract_strided_slice %6 {offsets = [0, 0], sizes = [104, 32], strides = [1, 1]} : vector<104x128xf32> to vector<104x32xf32>
    %cst_3 = arith.constant 0.000000e+00 : f32
    %8 = vector.broadcast %cst_3 : f32 to vector<104x32xf32>
    %9 = arith.maximumf %7, %8 : vector<104x32xf32>
    %c0_4 = arith.constant 0 : index
    %c0_5 = arith.constant 0 : index
    %10 = vector.load %arg2[%c0_4, %c0_5] : memref<104x32xf32, #tpu.memory_space<vmem>>, vector<104x32xf32>
    tpu.vector_store %arg2[%c0_4, %c0_5], %9 {strides = array<i32>} : memref<104x32xf32, #tpu.memory_space<vmem>>, vector<104x32xf32>,
    return
  }
}

</mosaic_0001>

<llo_original>
// kernel: conv_pool_forward.1
$region0: #{conv_pool_forward.1}
  #allocation0 [shape = 'u32[]', space=smem, size = 0x4, offset = 0x4, fixed_abs, tag = 'smem constant byte address 0x4 - core index']
  #allocation1 [shape = 'u32[144,128]{1,0:T(1,128)}', space=vmem, size = 0x12000, scoped, tag = 'internal scratch']
  %s0 = inlined_call_operand.vmem [shape: f32[104,128], index: 0, kind: input, shape index: {}]
  %s1 = inlined_call_operand.vmem [shape: f32[128,128], index: 1, kind: input, shape index: {}]
  %s2 = inlined_call_operand.vmem [shape: f32[104,32], index: 2, kind: output, shape index: {}]
  %s3 = sld [smem:[#allocation0]]
  $region18: #{conv_pool_forward.1} parent=0
    _
  %s5 = ssub.s32 1, %s3
  %s6 = scalar_select 0, %s5, %s3
  // Predicated region
  $region2: #{conv_pool_forward.1} parent=0 // pred_check
    _
  $region3: #{conv_pool_forward.1} parent=0 // pred_check_branch
    %8 = sbr.rel (0) target = $region5
  $region4: #{conv_pool_forward.1} parent=0 // pred_region
    _
  $region5: #{conv_pool_forward.1} parent=0 // pred_fallthru
    _
  // Predicated region
  $region6: #{conv_pool_forward.1} parent=0 // pred_check
    _
  $region7: #{conv_pool_forward.1} parent=0 // pred_check_branch
    %10 = sbr.rel (0) target = $region9
  $region8: #{conv_pool_forward.1} parent=0 // pred_region
    _
  $region9: #{conv_pool_forward.1} parent=0 // pred_fallthru
    _
  %v11 = vld [vmem:[%s0] sm:$0xff]
  %v12 = vld [vmem:[%s0 + $0x8] sm:$0xff]
  %v13 = vld [vmem:[%s0 + $0x10] sm:$0xff]
  %v14 = vld [vmem:[%s0 + $0x18] sm:$0xff]
  %v15 = vld [vmem:[%s0 + $0x20] sm:$0xff]
  %v16 = vld [vmem:[%s0 + $0x28] sm:$0xff]
  %v17 = vld [vmem:[%s0 + $0x30] sm:$0xff]
  %v18 = vld [vmem:[%s0 + $0x38] sm:$0xff]
  %v19 = vld [vmem:[%s0 + $0x40] sm:$0xff]
  %v20 = vld [vmem:[%s0 + $0x48] sm:$0xff]
  %v21 = vld [vmem:[%s0 + $0x50] sm:$0xff]
  %v22 = vld [vmem:[%s0 + $0x58] sm:$0xff]
  %v23 = vld [vmem:[%s0 + $0x60] sm:$0xff]
  %v24 = vld [vmem:[%s1] sm:$0xff]
  %v25 = vld [vmem:[%s1 + $0x8] sm:$0xff]
  %v26 = vld [vmem:[%s1 + $0x10] sm:$0xff]
  %v27 = vld [vmem:[%s1 + $0x18] sm:$0xff]
  %v28 = vld [vmem:[%s1 + $0x20] sm:$0xff]
  %v29 = vld [vmem:[%s1 + $0x28] sm:$0xff]
  %v30 = vld [vmem:[%s1 + $0x30] sm:$0xff]
  %v31 = vld [vmem:[%s1 + $0x38] sm:$0xff]
  %v32 = vld [vmem:[%s1 + $0x40] sm:$0xff]
  %v33 = vld [vmem:[%s1 + $0x48] sm:$0xff]
  %v34 = vld [vmem:[%s1 + $0x50] sm:$0xff]
  %v35 = vld [vmem:[%s1 + $0x58] sm:$0xff]
  %v36 = vld [vmem:[%s1 + $0x60] sm:$0xff]
  %v37 = vld [vmem:[%s1 + $0x68] sm:$0xff]
  %v38 = vld [vmem:[%s1 + $0x70] sm:$0xff]
  %v39 = vld [vmem:[%s1 + $0x78] sm:$0xff]
  %40 = vmatprep.subr.mxu0 0.0
  %41 = vmatpush1.msra.mxu0 %v39
  %42 = vmatprep.subr.mxu0 0.0
  %43 = vmatpush1.msra.mxu0 %v38
  %44 = vmatprep.subr.mxu0 0.0
  %45 = vmatpush1.msra.mxu0 %v37
  %46 = vmatprep.subr.mxu0 0.0
  %47 = vmatpush1.msra.mxu0 %v36
  %48 = vmatprep.subr.mxu0 0.0
  %49 = vmatpush1.msra.mxu0 %v35
  %50 = vmatprep.subr.mxu0 0.0
  %51 = vmatpush1.msra.mxu0 %v34
  %52 = vmatprep.subr.mxu0 0.0
  %53 = vmatpush1.msra.mxu0 %v33
  %54 = vmatprep.subr.mxu0 0.0
  %55 = vmatpush1.msra.mxu0 %v32
  %56 = vmatprep.subr.mxu0 0.0
  %57 = vmatpush1.msra.mxu0 %v31
  %58 = vmatprep.subr.mxu0 0.0
  %59 = vmatpush1.msra.mxu0 %v30
  %60 = vmatprep.subr.mxu0 0.0
  %61 = vmatpush1.msra.mxu0 %v29
  %62 = vmatprep.subr.mxu0 0.0
  %63 = vmatpush1.msra.mxu0 %v28
  %64 = vmatprep.subr.mxu0 0.0
  %65 = vmatpush1.msra.mxu0 %v27
  %66 = vmatprep.subr.mxu0 0.0
  %67 = vmatpush1.msra.mxu0 %v26
  %68 = vmatprep.subr.mxu0 0.0
  %69 = vmatpush1.msra.mxu0 %v25
  %70 = vmatprep.subr.mxu0 0.0
  %71 = vmatpush1.msra.mxu0 %v24
  %72 = vmatprep.subr.mxu0 0.0
  %73 = vmatpush2.msra.mxu0 0.0
  %74 = vmatprep.subr.mxu0 0.0
  %75 = vmatpush2.msra.mxu0 0.0
  %76 = vmatprep.subr.mxu0 0.0
  %77 = vmatpush2.msra.mxu0 0.0
  %78 = vmatprep.subr.mxu0 0.0
  %79 = vmatpush2.msra.mxu0 0.0
  %80 = vmatprep.subr.mxu0 0.0
  %81 = vmatpush2.msra.mxu0 0.0
  %82 = vmatprep.subr.mxu0 0.0
  %83 = vmatpush2.msra.mxu0 0.0
  %84 = vmatprep.subr.mxu0 0.0
  %85 = vmatpush2.msra.mxu0 0.0
  %86 = vmatprep.subr.mxu0 0.0
  %87 = vmatpush2.msra.mxu0 0.0
  %88 = vmatprep.subr.mxu0 0.0
  %89 = vmatpush2.msra.mxu0 0.0
  %90 = vmatprep.subr.mxu0 0.0
  %91 = vmatpush2.msra.mxu0 0.0
  %92 = vmatprep.subr.mxu0 0.0
  %93 = vmatpush2.msra.mxu0 0.0
  %94 = vmatprep.subr.mxu0 0.0
  %95 = vmatpush2.msra.mxu0 0.0
  %96 = vmatprep.subr.mxu0 0.0
  %97 = vmatpush2.msra.mxu0 0.0
  %98 = vmatprep.subr.mxu0 0.0
  %99 = vmatpush2.msra.mxu0 0.0
  %100 = vmatprep.subr.mxu0 0.0
  %101 = vmatpush2.msra.mxu0 0.0
  %102 = vmatprep.subr.mxu0 0.0
  %103 = vmatpush2.msra.mxu0 0.0
  %104 = vmatprep.mubr.f32.mxu0 0.0
  %105 = vmatmul.mubr.f32.gmra.mxu0 %v11
  %v106 = vpop.f32.mrf.mxu0
  %v107 = vadd.f32 0.0, %v106
  %v108 = vpop.f32.mrf.mxu0
  %109 = vmatprep.mubr.f32.mxu0 0.0
  %110 = vmatmul.mubr.f32.gmra.mxu0 %v12
  %v111 = vpop.f32.mrf.mxu0
  %v112 = vadd.f32 0.0, %v111
  %v113 = vpop.f32.mrf.mxu0
  %114 = vmatprep.mubr.f32.mxu0 0.0
  %115 = vmatmul.mubr.f32.gmra.mxu0 %v13
  %v116 = vpop.f32.mrf.mxu0
  %v117 = vadd.f32 0.0, %v116
  %v118 = vpop.f32.mrf.mxu0
  %119 = vmatprep.mubr.f32.mxu0 0.0
  %120 = vmatmul.mubr.f32.gmra.mxu0 %v14
  %v121 = vpop.f32.mrf.mxu0
  %v122 = vadd.f32 0.0, %v121
  %v123 = vpop.f32.mrf.mxu0
  %124 = vmatprep.mubr.f32.mxu0 0.0
  %125 = vmatmul.mubr.f32.gmra.mxu0 %v15
  %v126 = vpop.f32.mrf.mxu0
  %v127 = vadd.f32 0.0, %v126
  %v128 = vpop.f32.mrf.mxu0
  %129 = vmatprep.mubr.f32.mxu0 0.0
  %130 = vmatmul.mubr.f32.gmra.mxu0 %v16
  %v131 = vpop.f32.mrf.mxu0
  %v132 = vadd.f32 0.0, %v131
  %v133 = vpop.f32.mrf.mxu0
  %134 = vmatprep.mubr.f32.mxu0 0.0
  %135 = vmatmul.mubr.f32.gmra.mxu0 %v17
  %v136 = vpop.f32.mrf.mxu0
  %v137 = vadd.f32 0.0, %v136
  %v138 = vpop.f32.mrf.mxu0
  %139 = vmatprep.mubr.f32.mxu0 0.0
  %140 = vmatmul.mubr.f32.gmra.mxu0 %v18
  %v141 = vpop.f32.mrf.mxu0
  %v142 = vadd.f32 0.0, %v141
  %v143 = vpop.f32.mrf.mxu0
  %144 = vmatprep.mubr.f32.mxu0 0.0
  %145 = vmatmul.mubr.f32.gmra.mxu0 %v19
  %v146 = vpop.f32.mrf.mxu0
  %v147 = vadd.f32 0.0, %v146
  %v148 = vpop.f32.mrf.mxu0
  %149 = vmatprep.mubr.f32.mxu0 0.0
  %150 = vmatmul.mubr.f32.gmra.mxu0 %v20
  %v151 = vpop.f32.mrf.mxu0
  %v152 = vadd.f32 0.0, %v151
  %v153 = vpop.f32.mrf.mxu0
  %154 = vmatprep.mubr.f32.mxu0 0.0
  %155 = vmatmul.mubr.f32.gmra.mxu0 %v21
  %v156 = vpop.f32.mrf.mxu0
  %v157 = vadd.f32 0.0, %v156
  %v158 = vpop.f32.mrf.mxu0
  %159 = vmatprep.mubr.f32.mxu0 0.0
  %160 = vmatmul.mubr.f32.gmra.mxu0 %v22
  %v161 = vpop.f32.mrf.mxu0
  %v162 = vadd.f32 0.0, %v161
  %v163 = vpop.f32.mrf.mxu0
  %164 = vmatprep.mubr.f32.mxu0 0.0
  %165 = vmatmul.mubr.f32.gmra.mxu0 %v23
  %v166 = vpop.f32.mrf.mxu0
  %v167 = vadd.f32 0.0, %v166
  %v168 = vpop.f32.mrf.mxu0
  %169 = vdwg.mxu0
  %170 = vrot.lane.b32.xlu0 %v107, 64
  %v171 = vpop.permute.xlu0 %170
  %172 = vrot.lane.b32.xlu0 %v112, 64
  %v173 = vpop.permute.xlu0 %172
  %174 = vrot.lane.b32.xlu0 %v117, 64
  %v175 = vpop.permute.xlu0 %174
  %176 = vrot.lane.b32.xlu0 %v122, 64
  %v177 = vpop.permute.xlu0 %176
  %178 = vrot.lane.b32.xlu0 %v127, 64
  %v179 = vpop.permute.xlu0 %178
  %180 = vrot.lane.b32.xlu0 %v132, 64
  %v181 = vpop.permute.xlu0 %180
  %182 = vrot.lane.b32.xlu0 %v137, 64
  %v183 = vpop.permute.xlu0 %182
  %184 = vrot.lane.b32.xlu0 %v142, 64
  %v185 = vpop.permute.xlu0 %184
  %186 = vrot.lane.b32.xlu0 %v147, 64
  %v187 = vpop.permute.xlu0 %186
  %188 = vrot.lane.b32.xlu0 %v152, 64
  %v189 = vpop.permute.xlu0 %188
  %190 = vrot.lane.b32.xlu0 %v157, 64
  %v191 = vpop.permute.xlu0 %190
  %192 = vrot.lane.b32.xlu0 %v162, 64
  %v193 = vpop.permute.xlu0 %192
  %194 = vrot.lane.b32.xlu0 %v167, 64
  %v195 = vpop.permute.xlu0 %194
  %v196 = vmax.f32 %v107, %v171
  %v197 = vmax.f32 %v112, %v173
  %v198 = vmax.f32 %v117, %v175
  %v199 = vmax.f32 %v122, %v177
  %v200 = vmax.f32 %v127, %v179
  %v201 = vmax.f32 %v132, %v181
  %v202 = vmax.f32 %v137, %v183
  %v203 = vmax.f32 %v142, %v185
  %v204 = vmax.f32 %v147, %v187
  %v205 = vmax.f32 %v152, %v189
  %v206 = vmax.f32 %v157, %v191
  %v207 = vmax.f32 %v162, %v193
  %v208 = vmax.f32 %v167, %v195
  %209 = vrot.lane.b32.xlu0 %v196, 32
  %v210 = vpop.permute.xlu0 %209
  %211 = vrot.lane.b32.xlu0 %v197, 32
  %v212 = vpop.permute.xlu0 %211
  %213 = vrot.lane.b32.xlu0 %v198, 32
  %v214 = vpop.permute.xlu0 %213
  %215 = vrot.lane.b32.xlu0 %v199, 32
  %v216 = vpop.permute.xlu0 %215
  %217 = vrot.lane.b32.xlu0 %v200, 32
  %v218 = vpop.permute.xlu0 %217
  %219 = vrot.lane.b32.xlu0 %v201, 32
  %v220 = vpop.permute.xlu0 %219
  %221 = vrot.lane.b32.xlu0 %v202, 32
  %v222 = vpop.permute.xlu0 %221
  %223 = vrot.lane.b32.xlu0 %v203, 32
  %v224 = vpop.permute.xlu0 %223
  %225 = vrot.lane.b32.xlu0 %v204, 32
  %v226 = vpop.permute.xlu0 %225
  %227 = vrot.lane.b32.xlu0 %v205, 32
  %v228 = vpop.permute.xlu0 %227
  %229 = vrot.lane.b32.xlu0 %v206, 32
  %v230 = vpop.permute.xlu0 %229
  %231 = vrot.lane.b32.xlu0 %v207, 32
  %v232 = vpop.permute.xlu0 %231
  %233 = vrot.lane.b32.xlu0 %v208, 32
  %v234 = vpop.permute.xlu0 %233
  %v235 = vmax.f32 %v196, %v210
  %v236 = vmax.f32 %v197, %v212
  %v237 = vmax.f32 %v198, %v214
  %v238 = vmax.f32 %v199, %v216
  %v239 = vmax.f32 %v200, %v218
  %v240 = vmax.f32 %v201, %v220
  %v241 = vmax.f32 %v202, %v222
  %v242 = vmax.f32 %v203, %v224
  %v243 = vmax.f32 %v204, %v226
  %v244 = vmax.f32 %v205, %v228
  %v245 = vmax.f32 %v206, %v230
  %v246 = vmax.f32 %v207, %v232
  %v247 = vmax.f32 %v208, %v234
  %v248 = vmax.f32 %v235, 0.0
  %v249 = vmax.f32 %v236, 0.0
  %v250 = vmax.f32 %v237, 0.0
  %v251 = vmax.f32 %v238, 0.0
  %v252 = vmax.f32 %v239, 0.0
  %v253 = vmax.f32 %v240, 0.0
  %v254 = vmax.f32 %v241, 0.0
  %v255 = vmax.f32 %v242, 0.0
  %v256 = vmax.f32 %v243, 0.0
  %v257 = vmax.f32 %v244, 0.0
  %v258 = vmax.f32 %v245, 0.0
  %v259 = vmax.f32 %v246, 0.0
  %v260 = vmax.f32 %v247, 0.0
  %vm261 = vcmask 261120
  %262 = vst.msk [vmem:[%s2] sm:$0xff] %vm261, %v248
  %263 = vst.msk [vmem:[%s2 + $0x8] sm:$0xff] %vm261, %v249
  %264 = vst.msk [vmem:[%s2 + $0x10] sm:$0xff] %vm261, %v250
  %265 = vst.msk [vmem:[%s2 + $0x18] sm:$0xff] %vm261, %v251
  %266 = vst.msk [vmem:[%s2 + $0x20] sm:$0xff] %vm261, %v252
  %267 = vst.msk [vmem:[%s2 + $0x28] sm:$0xff] %vm261, %v253
  %268 = vst.msk [vmem:[%s2 + $0x30] sm:$0xff] %vm261, %v254
  %269 = vst.msk [vmem:[%s2 + $0x38] sm:$0xff] %vm261, %v255
  %270 = vst.msk [vmem:[%s2 + $0x40] sm:$0xff] %vm261, %v256
  %271 = vst.msk [vmem:[%s2 + $0x48] sm:$0xff] %vm261, %v257
  %272 = vst.msk [vmem:[%s2 + $0x50] sm:$0xff] %vm261, %v258
  %273 = vst.msk [vmem:[%s2 + $0x58] sm:$0xff] %vm261, %v259
  %274 = vst.msk [vmem:[%s2 + $0x60] sm:$0xff] %vm261, %v260
  // Predicated region
  $region10: #{conv_pool_forward.1} parent=0 // pred_check
    _
  $region11: #{conv_pool_forward.1} parent=0 // pred_check_branch
    %276 = sbr.rel (0) target = $region13
  $region12: #{conv_pool_forward.1} parent=0 // pred_region
    _
  $region13: #{conv_pool_forward.1} parent=0 // pred_fallthru
    _
  // Predicated region
  $region14: #{conv_pool_forward.1} parent=0 // pred_check
    _
  $region15: #{conv_pool_forward.1} parent=0 // pred_check_branch
    %278 = sbr.rel (0) target = $region17
  $region16: #{conv_pool_forward.1} parent=0 // pred_region
    _
  $region17: #{conv_pool_forward.1} parent=0 // pred_fallthru
    _

</llo_original>
